<compile_context>
chip_gen: v7x
topology: tpu7x:2x2x1
jax: 0.10.0
libtpu: 0.0.40
codegen_flags: <defaults>
</compile_context>

<pallas_src>
import jax
import jax.numpy as jnp
from jax.experimental import pallas as pl
from jax.experimental.pallas import tpu as pltpu


def _round_up(n, m):
    return ((n + m - 1) // m) * m


def _cdiv(a, b):
    return -(-a // b)


def _vmem_limit_bytes():
    """Generation-aware VMEM limit (~70% of physical; 64 MiB fallback)."""
    cap = 64 * 1024 * 1024
    try:
        info = pltpu.get_tpu_info()
        cap = int(getattr(info, "vmem_capacity_bytes", cap))
    except Exception:  # not on TPU / query unavailable -> conservative default
        pass
    return int(cap * 0.7)


def _pick_block_rows(batch, c_pad, itemsize, row_align, tile_budget_bytes):
    """Batch-tile height: VMEM-budgeted, sublane-aligned, >= ~8-step grid."""
    # Live activation tiles: x tile + out tile, each double-buffered = 4 tiles.
    cap = tile_budget_bytes // (4 * c_pad * itemsize)
    cap = max(row_align, (cap // row_align) * row_align)
    # Target >= 8 grid steps so the BlockSpec pipeline overlaps DMA with compute
    # and both v7x TensorCores get several row blocks each.
    steps_target = 8
    target = _round_up(max(1, _cdiv(batch, steps_target)), row_align)
    return max(row_align, min(cap, 1024, target))


def _senet_kernel(x_ref, w1t_ref, w2t_ref, o_ref):
    # x_ref:   (TB, Cp)  batch tile of inputs (pipelined)
    # w1t_ref: (Cp, Hp)  squeeze weight, transposed + zero-padded (VMEM-resident)
    # w2t_ref: (Hp, Cp)  excitation weight, transposed + zero-padded (VMEM-resident)
    x = x_ref[...]
    xm = x if x.dtype == w1t_ref.dtype else x.astype(w1t_ref.dtype)
    # squeeze: (TB, Cp) @ (Cp, Hp) -> (TB, Hp), f32 accumulation on the MXU
    g = jnp.dot(xm, w1t_ref[...], preferred_element_type=jnp.float32)
    g = jnp.maximum(g, 0.0)                      # ReLU (VPU, f32)
    if w2t_ref.dtype != jnp.float32:
        g = g.astype(w2t_ref.dtype)              # keep MXU operands same-dtype
    # excitation: (TB, Hp) @ (Hp, Cp) -> (TB, Cp), f32 accumulation
    g = jnp.dot(g, w2t_ref[...], preferred_element_type=jnp.float32)
    g = jax.nn.sigmoid(g)                        # EUP, f32
    # Gate in the I/O dtype (bf16 multiply for bf16 models, f32 for f32 models) —
    # avoids materializing an f32 copy of the whole x tile.
    o_ref[...] = x * g.astype(x.dtype)


def senet_forward(x, w1, w2, *, block_rows=None, mxu_dtype=jnp.bfloat16):
    """SENet forward.

    x:  [B, C]
    w1: [C//ratio, C]   squeeze weight   (nn.Linear, bias=False)
    w2: [C, C//ratio]   excitation weight (nn.Linear, bias=False)
    mxu_dtype: dtype of the matmul operands (accumulation is always f32).
               None -> use x.dtype (exact f32 path for f32 inputs).
    """
    B, C = x.shape
    H = w1.shape[0]
    assert w1.shape == (H, C) and w2.shape == (C, H)

    io_dtype = x.dtype
    io_itemsize = jnp.dtype(io_dtype).itemsize
    w_dtype = jnp.dtype(io_dtype) if mxu_dtype is None else jnp.dtype(mxu_dtype)
    w_itemsize = w_dtype.itemsize
    row_align = max(8, 32 // io_itemsize)        # sublane packing: 8 rows f32, 16 rows bf16

    # Lane-dense padding of the feature dims (exact: padded columns/rows are zero
    # and padded outputs are sliced off).
    Cp = _round_up(C, 128)
    Hp = _round_up(max(H, 128), 128)
    w1t = jnp.pad(w1.T.astype(w_dtype), ((0, Cp - C), (0, Hp - H)))
    w2t = jnp.pad(w2.T.astype(w_dtype), ((0, Hp - H), (0, Cp - C)))

    # VMEM budget: account for the resident weights (conservatively assume 2
    # buffers each in case single-buffering is unavailable) + compiler scratch.
    vmem_limit = _vmem_limit_bytes()
    weight_bytes = 2 * 2 * Cp * Hp * w_itemsize
    tile_budget = vmem_limit - weight_bytes - (2 << 20)
    min_budget = 4 * row_align * Cp * io_itemsize
    if tile_budget < min_budget:
        # TODO(synk): for very large C/H (weights not VMEM-resident) stream the
        # weights from HBM / K-tile the squeeze matmul instead of shrinking tiles.
        tile_budget = min_budget

    if block_rows is None:
        block_rows = _pick_block_rows(B, Cp, io_itemsize, row_align, tile_budget)
    block_rows = max(row_align, _round_up(block_rows, row_align))

    # Best-effort even grid length (v7x: two TensorCores split the parallel axis).
    steps = _cdiv(B, block_rows)
    if steps > 1 and steps % 2 == 1:
        alt = max(row_align, _round_up(_cdiv(B, steps + 1), row_align))
        if _cdiv(B, alt) % 2 == 0:
            block_rows = alt
            steps = _cdiv(B, alt)
    Bp = steps * block_rows

    # Only pad when actually needed (extra activation copies roughly double the
    # HBM traffic of this memory-bound op).
    pad_b, pad_c = Bp - B, Cp - C
    x_in = jnp.pad(x, ((0, pad_b), (0, pad_c))) if (pad_b or pad_c) else x

    def _call(single_buffer_weights):
        if single_buffer_weights:
            # Constant index_map -> weights never change across the grid; a single
            # buffer halves their VMEM footprint.
            w1_spec = pl.BlockSpec((Cp, Hp), lambda i: (0, 0),
                                   pipeline_mode=pl.Buffered(1))
            w2_spec = pl.BlockSpec((Hp, Cp), lambda i: (0, 0),
                                   pipeline_mode=pl.Buffered(1))
        else:
            w1_spec = pl.BlockSpec((Cp, Hp), lambda i: (0, 0))
            w2_spec = pl.BlockSpec((Hp, Cp), lambda i: (0, 0))
        return pl.pallas_call(
            _senet_kernel,
            out_shape=jax.ShapeDtypeStruct((Bp, Cp), io_dtype),
            grid_spec=pltpu.PrefetchScalarGridSpec(
                num_scalar_prefetch=0,
                grid=(steps,),
                in_specs=[
                    pl.BlockSpec((block_rows, Cp), lambda i: (i, 0)),  # x tile
                    w1_spec,                                           # w1^T resident
                    w2_spec,                                           # w2^T resident
                ],
                out_specs=pl.BlockSpec((block_rows, Cp), lambda i: (i, 0)),
            ),
            compiler_params=pltpu.CompilerParams(
                dimension_semantics=("parallel",),
                vmem_limit_bytes=vmem_limit,
            ),
        )(x_in, w1t, w2t)

    try:
        out = _call(single_buffer_weights=True)
    except Exception:
        # Fallback for environments where pipeline_mode=Buffered(1) on the
        # top-level pallas_call grid is unsupported.
        out = _call(single_buffer_weights=False)

    if pad_b or pad_c:
        out = out[:B, :C]
    return out


def senet_reference(x, w1, w2):
    hi = jax.lax.Precision.HIGHEST
    g = jnp.maximum(jnp.dot(x, w1.T, precision=hi), 0.0)
    g = jax.nn.sigmoid(jnp.dot(g, w2.T, precision=hi))
    return x * g


if __name__ == "__main__":
    key = jax.random.PRNGKey(0)
    k_x, k_w1, k_w2 = jax.random.split(key, 3)

    batch = 16
    channels = 32
    ratio = 8
    hidden = channels // ratio  # 4

    x = jax.random.normal(k_x, (batch, channels), dtype=jnp.float32)
    # Deterministic parameter init (mimics PyTorch Linear's uniform fan-in scale).
    bound1 = 1.0 / jnp.sqrt(channels)
    bound2 = 1.0 / jnp.sqrt(hidden)
    w1 = jax.random.uniform(k_w1, (hidden, channels), minval=-bound1, maxval=bound1,
                            dtype=jnp.float32)   # squeeze weight [C//r, C]
    w2 = jax.random.uniform(k_w2, (channels, hidden), minval=-bound2, maxval=bound2,
                            dtype=jnp.float32)   # excitation weight [C, C//r]

    ref = senet_reference(x, w1, w2)

    # Exact f32 MXU path — tight correctness check.
    out_f32 = jax.block_until_ready(senet_forward(x, w1, w2, mxu_dtype=None))
    assert out_f32.shape == ref.shape, "shape mismatch vs reference (f32 path)"
    assert jnp.allclose(out_f32, ref, atol=1e-4, rtol=1e-4), "mismatch vs reference (f32 path)"

    # Default perf path (bf16 MXU operands, f32 accumulation) — loose check
    # (the gate goes through a sigmoid, so the precision drop is tiny).
    out = jax.block_until_ready(senet_forward(x, w1, w2))
    assert out.shape == ref.shape, "shape mismatch vs reference (bf16 path)"
    assert jnp.allclose(out, ref, atol=3e-2, rtol=3e-2), "mismatch vs reference (bf16 path)"

    print("KERNEL_OK")
</pallas_src>

<mosaic_0001>
module attributes {stable_mosaic.version = 11 : i64} {
  func.func @_senet_kernel(%arg0: i32, %arg1: memref<8x128xf32, #tpu.memory_space<vmem>>, %arg2: memref<128x128xf32, #tpu.memory_space<vmem>>, %arg3: memref<128x128xf32, #tpu.memory_space<vmem>>, %arg4: memref<8x128xf32, #tpu.memory_space<vmem>>) attributes {dimension_semantics = [#tpu.dimension_semantics<parallel>], iteration_bounds = array<i64: 2>, scalar_prefetch = 0 : i64, scratch_operands = 0 : i64, tpu.core_type = #tpu.core_type<tc>, window_params = [{transform_indices = @transform_0, window_bounds = array<i64: 8, 128>}, {pipeline_mode = #tpu.pipeline_mode<synchronous>, transform_indices = @transform_1, window_bounds = array<i64: 128, 128>}, {pipeline_mode = #tpu.pipeline_mode<synchronous>, transform_indices = @transform_2, window_bounds = array<i64: 128, 128>}, {transform_indices = @transform_3, window_bounds = array<i64: 8, 128>}]} {
    %c0 = arith.constant 0 : index
    %c0_0 = arith.constant 0 : index
    %0 = vector.load %arg1[%c0, %c0_0] : memref<8x128xf32, #tpu.memory_space<vmem>>, vector<8x128xf32>
    %c0_1 = arith.constant 0 : index
    %c0_2 = arith.constant 0 : index
    %1 = vector.load %arg2[%c0_1, %c0_2] : memref<128x128xf32, #tpu.memory_space<vmem>>, vector<128x128xf32>
    %cst = arith.constant dense<0.000000e+00> : vector<8x128xf32>
    %2 = tpu.matmul %0, %1, %cst {dimension_numbers = #tpu.dot_dimension_numbers<[1], [0], [0], [1], [0, 0, 1, 1], [], []>} : vector<8x128xf32>, vector<128x128xf32>, vector<8x128xf32> -> vector<8x128xf32>
    %cst_3 = arith.constant 0.000000e+00 : f32
    %3 = vector.broadcast %cst_3 : f32 to vector<8x128xf32>
    %4 = arith.maximumf %2, %3 : vector<8x128xf32>
    %c0_4 = arith.constant 0 : index
    %c0_5 = arith.constant 0 : index
    %5 = vector.load %arg3[%c0_4, %c0_5] : memref<128x128xf32, #tpu.memory_space<vmem>>, vector<128x128xf32>
    %cst_6 = arith.constant dense<0.000000e+00> : vector<8x128xf32>
    %6 = tpu.matmul %4, %5, %cst_6 {dimension_numbers = #tpu.dot_dimension_numbers<[1], [0], [0], [1], [0, 0, 1, 1], [], []>} : vector<8x128xf32>, vector<128x128xf32>, vector<8x128xf32> -> vector<8x128xf32>
    %7 = arith.negf %6 : vector<8x128xf32>
    %8 = math.exp %7 : vector<8x128xf32>
    %cst_7 = arith.constant 1.000000e+00 : f32
    %9 = vector.broadcast %cst_7 : f32 to vector<8x128xf32>
    %10 = arith.addf %9, %8 : vector<8x128xf32>
    %11 = arith.divf %9, %10 : vector<8x128xf32>
    %12 = arith.mulf %0, %11 : vector<8x128xf32>
    %c0_8 = arith.constant 0 : index
    %c0_9 = arith.constant 0 : index
    %13 = vector.load %arg4[%c0_8, %c0_9] : memref<8x128xf32, #tpu.memory_space<vmem>>, vector<8x128xf32>
    tpu.vector_store %arg4[%c0_8, %c0_9], %12 {strides = array<i32>} : memref<8x128xf32, #tpu.memory_space<vmem>>, vector<8x128xf32>,
    return
  }
  func.func @transform_0(%arg0: i32) -> (i32, i32) {
    %c0_i32 = arith.constant 0 : i32
    %c0_i32_0 = arith.constant 0 : i32
    return %arg0, %c0_i32 : i32, i32
  }
  func.func @transform_1(%arg0: i32) -> (i32, i32) {
    %c0_i32 = arith.constant 0 : i32
    %c0_i32_0 = arith.constant 0 : i32
    %c0_i32_1 = arith.constant 0 : i32
    return %c0_i32, %c0_i32_0 : i32, i32
  }
  func.func @transform_2(%arg0: i32) -> (i32, i32) {
    %c0_i32 = arith.constant 0 : i32
    %c0_i32_0 = arith.constant 0 : i32
    %c0_i32_1 = arith.constant 0 : i32
    return %c0_i32, %c0_i32_0 : i32, i32
  }
  func.func @transform_3(%arg0: i32) -> (i32, i32) {
    %c0_i32 = arith.constant 0 : i32
    %c0_i32_0 = arith.constant 0 : i32
    return %arg0, %c0_i32 : i32, i32
  }
}

module attributes {stable_mosaic.version = 11 : i64} {
  func.func @_senet_kernel(%arg0: i32, %arg1: memref<8x128xf32, #tpu.memory_space<vmem>>, %arg2: memref<128x128xf32, #tpu.memory_space<vmem>>, %arg3: memref<128x128xf32, #tpu.memory_space<vmem>>, %arg4: memref<8x128xf32, #tpu.memory_space<vmem>>) attributes {dimension_semantics = [#tpu.dimension_semantics<parallel>], iteration_bounds = array<i64: 2>, scalar_prefetch = 0 : i64, scratch_operands = 0 : i64, tpu.core_type = #tpu.core_type<tc>, window_params = [{transform_indices = @transform_0, window_bounds = array<i64: 8, 128>}, {pipeline_mode = #tpu.pipeline_mode<synchronous>, transform_indices = @transform_1, window_bounds = array<i64: 128, 128>}, {pipeline_mode = #tpu.pipeline_mode<synchronous>, transform_indices = @transform_2, window_bounds = array<i64: 128, 128>}, {transform_indices = @transform_3, window_bounds = array<i64: 8, 128>}]} {
    %c0 = arith.constant 0 : index
    %c0_0 = arith.constant 0 : index
    %0 = vector.load %arg1[%c0, %c0_0] : memref<8x128xf32, #tpu.memory_space<vmem>>, vector<8x128xf32>
    %c0_1 = arith.constant 0 : index
    %c0_2 = arith.constant 0 : index
    %1 = vector.load %arg2[%c0_1, %c0_2] : memref<128x128xf32, #tpu.memory_space<vmem>>, vector<128x128xf32>
    %cst = arith.constant dense<0.000000e+00> : vector<8x128xf32>
    %2 = tpu.matmul %0, %1, %cst {dimension_numbers = #tpu.dot_dimension_numbers<[1], [0], [0], [1], [0, 0, 1, 1], [], []>} : vector<8x128xf32>, vector<128x128xf32>, vector<8x128xf32> -> vector<8x128xf32>
    %cst_3 = arith.constant 0.000000e+00 : f32
    %3 = vector.broadcast %cst_3 : f32 to vector<8x128xf32>
    %4 = arith.maximumf %2, %3 : vector<8x128xf32>
    %c0_4 = arith.constant 0 : index
    %c0_5 = arith.constant 0 : index
    %5 = vector.load %arg3[%c0_4, %c0_5] : memref<128x128xf32, #tpu.memory_space<vmem>>, vector<128x128xf32>
    %cst_6 = arith.constant dense<0.000000e+00> : vector<8x128xf32>
    %6 = tpu.matmul %4, %5, %cst_6 {dimension_numbers = #tpu.dot_dimension_numbers<[1], [0], [0], [1], [0, 0, 1, 1], [], []>} : vector<8x128xf32>, vector<128x128xf32>, vector<8x128xf32> -> vector<8x128xf32>
    %7 = arith.negf %6 : vector<8x128xf32>
    %8 = math.exp %7 : vector<8x128xf32>
    %cst_7 = arith.constant 1.000000e+00 : f32
    %9 = vector.broadcast %cst_7 : f32 to vector<8x128xf32>
    %10 = arith.addf %9, %8 : vector<8x128xf32>
    %11 = arith.divf %9, %10 : vector<8x128xf32>
    %12 = arith.mulf %0, %11 : vector<8x128xf32>
    %c0_8 = arith.constant 0 : index
    %c0_9 = arith.constant 0 : index
    %13 = vector.load %arg4[%c0_8, %c0_9] : memref<8x128xf32, #tpu.memory_space<vmem>>, vector<8x128xf32>
    tpu.vector_store %arg4[%c0_8, %c0_9], %12 {strides = array<i32>} : memref<8x128xf32, #tpu.memory_space<vmem>>, vector<8x128xf32>,
    return
  }
  func.func @transform_0(%arg0: i32) -> (i32, i32) {
    %c0_i32 = arith.constant 0 : i32
    %c0_i32_0 = arith.constant 0 : i32
    return %arg0, %c0_i32 : i32, i32
  }
  func.func @transform_1(%arg0: i32) -> (i32, i32) {
    %c0_i32 = arith.constant 0 : i32
    %c0_i32_0 = arith.constant 0 : i32
    %c0_i32_1 = arith.constant 0 : i32
    return %c0_i32, %c0_i32_0 : i32, i32
  }
  func.func @transform_2(%arg0: i32) -> (i32, i32) {
    %c0_i32 = arith.constant 0 : i32
    %c0_i32_0 = arith.constant 0 : i32
    %c0_i32_1 = arith.constant 0 : i32
    return %c0_i32, %c0_i32_0 : i32, i32
  }
  func.func @transform_3(%arg0: i32) -> (i32, i32) {
    %c0_i32 = arith.constant 0 : i32
    %c0_i32_0 = arith.constant 0 : i32
    return %arg0, %c0_i32 : i32, i32
  }
}

</mosaic_0001>

<llo_original>
// kernel: tpu_custom_call.1
$region0: #{tpu_custom_call.1}
  #allocation0 [shape = 'u32[]', space=smem, size = 0x4, offset = 0x4, fixed_abs, tag = 'smem constant byte address 0x4 - core index']
  #allocation1 [shape = 'u32[144,128]{1,0:T(1,128)}', space=vmem, size = 0x12000, scoped, tag = 'internal scratch']
  %s0 = inlined_call_operand.hbm [shape: f32[16,128], index: 0, kind: input, shape index: {}]
  %s1 = inlined_call_operand.hbm [shape: f32[128,128], index: 1, kind: input, shape index: {}]
  %s2 = inlined_call_operand.hbm [shape: f32[128,128], index: 2, kind: input, shape index: {}]
  %s3 = inlined_call_operand.hbm [shape: f32[16,128], index: 3, kind: output, shape index: {}]
  %s4 = sld [smem:[#allocation0]]
  $region57: #{tpu_custom_call.1} parent=0
    _
  %s6 = ssub.s32 1, %s4
  %s7 = scalar_select 0, %s6, %s4
  $region1: #{tpu_custom_call.1} parent=0
    #allocation2 [shape = 'u8[8192]{0}', space=vmem, size = 0x2000, scoped, tag = 'input window, operand 0']
    #allocation3 [shape = 's32[2]{0}', space=sflag, size = 0x8, scoped, tag = 'scoped memory for tpu_custom_call.1']
    #allocation4 [shape = 's32[2]{0}', space=sflag, size = 0x8, scoped, tag = 'scoped memory for tpu_custom_call.1']
    #allocation5 [shape = 'u8[65536]{0}', space=vmem, size = 0x10000, scoped, tag = 'input window, operand 1, single buffered']
    #allocation6 [shape = 's32[1]{0}', space=sflag, size = 0x4, scoped, tag = 'scoped memory for tpu_custom_call.1']
    #allocation7 [shape = 'u8[65536]{0}', space=vmem, size = 0x10000, scoped, tag = 'input window, operand 2, single buffered']
    #allocation8 [shape = 'u8[8192]{0}', space=vmem, size = 0x2000, scoped, tag = 'output window, operand 0']
    %8 = vsyncpa [#allocation3], 0
    %s9 = scalar_lea.sflag [#allocation3], 1
    %10 = vsyncpa %s9, 0
    %11 = vsyncpa [#allocation6], 0
    %12 = vsyncpa [#allocation4], 0
    %s13 = scalar_lea.sflag [#allocation4], 1
    %14 = vsyncpa %s13, 0
    loop: start=0, step=1, limit=4
    $region2: #{tpu_custom_call.1} parent=1 // loop_pre_header
      _
    $region3: #{tpu_custom_call.1} parent=1 // loop_header
      %s16 = sphi 0, %s20
      %p17 = scmp.ge.s32.totalorder %s16, 4
      %s26 = sphi 0, %s28
      %s29 = sphi 0, %s26
      %s30 = sphi 0, %s29
      %s46 = sphi 0, %s30
      %s50 = sphi 0, %s50
      %s52 = sphi 0, %s50
      %s53 = sphi 0, %s52
      %s67 = sphi 0, %s53
      %s71 = sphi 0, %s71
      %s73 = sphi 0, %s71
      %s74 = sphi 0, %s73
      %s88 = sphi 0, %s74
      %s94 = sphi 0, %s96
      %s97 = sphi 0, %s94
      %s98 = sphi 0, %s97
      %s114 = sphi 0, %s98
    $region4: #{tpu_custom_call.1} parent=1 // loop_header_branch
      %19 = sbr.rel (%p17) target = $region8
    $region5: #{tpu_custom_call.1} parent=1 // loop_body
      %s21 = ssub.s32 %s16, 1
      %s22 = ssub.s32 %s16, 2
      %s23 = sadd.s32 %s16, 1
      %s24 = ssub.s32 %s16, %s23
      %p25 = scmp.eq.s32.totalorder %s24, 0
      %s27 = sadd.s32 %s26, 1
      %s28 = scalar_select %p25, %s26, %s27
      %p31 = pneg %p25
      %p32 = scmp.eq.s32.totalorder %s16, 1
      %p33 = por %p31, %p32
      %p34 = scmp.ne.s32.totalorder %s26, %s29
      %p35 = scmp.eq.s32.totalorder %s16, 0
      %p36 = por %p34, %p35
      %p37 = scmp.ne.s32.totalorder %s26, %s29
      %p38 = scmp.eq.s32.totalorder %s21, 1
      %p39 = por %p37, %p38
      %p40 = scmp.ne.s32.totalorder %s29, %s30
      %p41 = scmp.eq.s32.totalorder %s21, 0
      %p42 = por %p40, %p41
      %p43 = scmp.ne.s32.totalorder %s29, %s30
      %p44 = scmp.eq.s32.totalorder %s22, 1
      %p45 = por %p43, %p44
      %p47 = scmp.ne.s32.totalorder %s30, %s46
      %p48 = scmp.eq.s32.totalorder %s22, 0
      %p49 = por %p47, %p48
      %s51 = sadd.s32 %s50, 1
      %p54 = scmp.eq.s32.totalorder %s16, 1
      %p55 = scmp.ne.s32.totalorder %s50, %s52
      %p56 = scmp.eq.s32.totalorder %s16, 0
      %p57 = por %p55, %p56
      %p58 = scmp.ne.s32.totalorder %s50, %s52
      %p59 = scmp.eq.s32.totalorder %s21, 1
      %p60 = por %p58, %p59
      %p61 = scmp.ne.s32.totalorder %s52, %s53
      %p62 = scmp.eq.s32.totalorder %s21, 0
      %p63 = por %p61, %p62
      %p64 = scmp.ne.s32.totalorder %s52, %s53
      %p65 = scmp.eq.s32.totalorder %s22, 1
      %p66 = por %p64, %p65
      %p68 = scmp.ne.s32.totalorder %s53, %s67
      %p69 = scmp.eq.s32.totalorder %s22, 0
      %p70 = por %p68, %p69
      %s72 = sadd.s32 %s71, 1
      %p75 = scmp.eq.s32.totalorder %s16, 1
      %p76 = scmp.ne.s32.totalorder %s71, %s73
      %p77 = scmp.eq.s32.totalorder %s16, 0
      %p78 = por %p76, %p77
      %p79 = scmp.ne.s32.totalorder %s71, %s73
      %p80 = scmp.eq.s32.totalorder %s21, 1
      %p81 = por %p79, %p80
      %p82 = scmp.ne.s32.totalorder %s73, %s74
      %p83 = scmp.eq.s32.totalorder %s21, 0
      %p84 = por %p82, %p83
      %p85 = scmp.ne.s32.totalorder %s73, %s74
      %p86 = scmp.eq.s32.totalorder %s22, 1
      %p87 = por %p85, %p86
      %p89 = scmp.ne.s32.totalorder %s74, %s88
      %p90 = scmp.eq.s32.totalorder %s22, 0
      %p91 = por %p89, %p90
      %s92 = ssub.s32 %s16, %s23
      %p93 = scmp.eq.s32.totalorder %s92, 0
      %s95 = sadd.s32 %s94, 1
      %s96 = scalar_select %p93, %s94, %s95
      %p99 = pneg %p93
      %p100 = scmp.eq.s32.totalorder %s16, 1
      %p101 = por %p99, %p100
      %p102 = scmp.ne.s32.totalorder %s94, %s97
      %p103 = scmp.eq.s32.totalorder %s16, 0
      %p104 = por %p102, %p103
      %p105 = scmp.ne.s32.totalorder %s94, %s97
      %p106 = scmp.eq.s32.totalorder %s21, 1
      %p107 = por %p105, %p106
      %p108 = scmp.ne.s32.totalorder %s97, %s98
      %p109 = scmp.eq.s32.totalorder %s21, 0
      %p110 = por %p108, %p109
      %p111 = scmp.ne.s32.totalorder %s97, %s98
      %p112 = scmp.eq.s32.totalorder %s22, 1
      %p113 = por %p111, %p112
      %p115 = scmp.ne.s32.totalorder %s98, %s114
      %p116 = scmp.eq.s32.totalorder %s22, 0
      %p117 = por %p115, %p116
      %p118 = scmp.le.s32.totalorder 1, %s16
      %p119 = scmp.lt.s32.totalorder %s16, 3
      %p120 = pnand %p118, %p119
      %p121 = pneg %p120
      // Predicated region
      $region9: #{tpu_custom_call.1} parent=5 // pred_check
        _
      $region10: #{tpu_custom_call.1} parent=5 // pred_check_branch
        %123 = sbr.rel (%p120) target = $region12
      $region11: #{tpu_custom_call.1} parent=5 // pred_region
        %s124 = ssub.s32 %s16, 1
        // Predicated region
        $region13: #{tpu_custom_call.1} parent=11 // pred_check
          %p125 = pneg %p63
        $region14: #{tpu_custom_call.1} parent=11 // pred_check_branch
          %127 = sbr.rel (%p125) target = $region16
        $region15: #{tpu_custom_call.1} parent=11 // pred_region
          %s129 = ssub.s32 2048, 2048
          %130 = vsyncadd [#allocation6], %s129
          %s131 = sshll.u32 [#allocation5], 4
          %s132 = int_to_ptr.vmem [resolvable:$true] %s131
          %137 = dma.hbm_to_vmem [thread:$0]  %s1, 2048, %s132, [#allocation6], 128, 128, 8
        $region16: #{tpu_custom_call.1} parent=11 // pred_fallthru
          _
        // Predicated region
        $region17: #{tpu_custom_call.1} parent=11 // pred_check
          %p138 = pneg %p84
        $region18: #{tpu_custom_call.1} parent=11 // pred_check_branch
          %140 = sbr.rel (%p138) target = $region20
        $region19: #{tpu_custom_call.1} parent=11 // pred_region
          %s142 = ssub.s32 2048, 2048
          %143 = vsyncadd [#allocation6], %s142
          %s144 = sshll.u32 [#allocation7], 4
          %s145 = int_to_ptr.vmem [resolvable:$true] %s144
          %150 = dma.hbm_to_vmem [thread:$0]  %s2, 2048, %s145, [#allocation6], 128, 128, 8
        $region20: #{tpu_custom_call.1} parent=11 // pred_fallthru
          _
      $region12: #{tpu_custom_call.1} parent=5 // pred_fallthru
        _
      %p151 = scmp.lt.s32.totalorder %s16, 2
      // Predicated region
      $region21: #{tpu_custom_call.1} parent=5 // pred_check
        %p152 = pneg %p151
      $region22: #{tpu_custom_call.1} parent=5 // pred_check_branch
        %154 = sbr.rel (%p152) target = $region24
      $region23: #{tpu_custom_call.1} parent=5 // pred_region
        // Predicated region
        $region25: #{tpu_custom_call.1} parent=23 // pred_check
          %p155 = pneg %p36
        $region26: #{tpu_custom_call.1} parent=23 // pred_check_branch
          %157 = sbr.rel (%p155) target = $region28
        $region27: #{tpu_custom_call.1} parent=23 // pred_region
          %s158 = sand.u32 %s26, 1
          %s159 = scalar_lea.sflag [#allocation3], %s158
          %s160 = sand.u32 %s26, 1
          %s161 = smul.addr %s160, 8
          %s162 = scalar_lea.vmem [#allocation2], %s161
          %s164 = ssub.s32 128, 128
          %165 = vsyncadd %s159, %s164
          %s166 = smul.addr %s16, 128
          %s167 = scalar_lea.hbm %s0, %s166
          %s169 = sshll.u32 %s162, 4
          %s170 = int_to_ptr.vmem [resolvable:$true] %s169
          %172 = dma.hbm_to_vmem [thread:$0]  %s167, 128, %s170, %s159
        $region28: #{tpu_custom_call.1} parent=23 // pred_fallthru
          _
      $region24: #{tpu_custom_call.1} parent=5 // pred_fallthru
        _
      %p173 = scmp.le.s32.totalorder 1, %s16
      %p174 = scmp.lt.s32.totalorder %s16, 3
      %p175 = pnand %p173, %p174
      %p176 = pneg %p175
      // Predicated region
      $region29: #{tpu_custom_call.1} parent=5 // pred_check
        _
      $region30: #{tpu_custom_call.1} parent=5 // pred_check_branch
        %178 = sbr.rel (%p175) target = $region32
      $region31: #{tpu_custom_call.1} parent=5 // pred_region
        %s179 = ssub.s32 %s16, 1
        %s180 = sand.u32 %s29, 1
        %s181 = scalar_lea.sflag [#allocation3], %s180
        %s182 = sand.u32 %s29, 1
        %s183 = smul.addr %s182, 8
        %s184 = scalar_lea.vmem [#allocation2], %s183
        // Predicated region
        $region33: #{tpu_custom_call.1} parent=31 // pred_check
          %p185 = pneg %p42
        $region34: #{tpu_custom_call.1} parent=31 // pred_check_branch
          %187 = sbr.rel (%p185) target = $region36
        $region35: #{tpu_custom_call.1} parent=31 // pred_region
          %188 = dma.done %s181, 128
        $region36: #{tpu_custom_call.1} parent=31 // pred_fallthru
          _
        // Predicated region
        $region37: #{tpu_custom_call.1} parent=31 // pred_check
          %p189 = pneg %p63
        $region38: #{tpu_custom_call.1} parent=31 // pred_check_branch
          %191 = sbr.rel (%p189) target = $region40
        $region39: #{tpu_custom_call.1} parent=31 // pred_region
          %192 = dma.done [#allocation6], 2048
        $region40: #{tpu_custom_call.1} parent=31 // pred_fallthru
          _
        // Predicated region
        $region41: #{tpu_custom_call.1} parent=31 // pred_check
          %p193 = pneg %p84
        $region42: #{tpu_custom_call.1} parent=31 // pred_check_branch
          %195 = sbr.rel (%p193) target = $region44
        $region43: #{tpu_custom_call.1} parent=31 // pred_region
          %196 = dma.done [#allocation6], 2048
        $region44: #{tpu_custom_call.1} parent=31 // pred_fallthru
          _
        %s197 = sand.u32 %s29, 1
        %s198 = scalar_lea.sflag [#allocation3], %s197
        %s199 = sand.u32 %s29, 1
        %s200 = smul.addr %s199, 8
        %s201 = scalar_lea.vmem [#allocation2], %s200
        %p202 = pneg %p42
        %p203 = pneg %p39
        %p204 = pneg %p63
        %p205 = pneg %p60
        %p206 = pneg %p84
        %p207 = pneg %p81
        %p208 = pneg %p110
        %p209 = pneg %p107
        %s210 = sand.u32 %s97, 1
        %s211 = scalar_lea.sflag [#allocation4], %s210
        %s212 = sand.u32 %s97, 1
        %s213 = smul.addr %s212, 8
        %s214 = scalar_lea.vmem [#allocation8], %s213
        %v215 = vld [vmem:[%s184] sm:$0xff]
        %v216 = vld [vmem:[#allocation5] sm:$0xff]
        %v217 = vld [vmem:[#allocation5 + $0x8] sm:$0xff]
        %v218 = vld [vmem:[#allocation5 + $0x10] sm:$0xff]
        %v219 = vld [vmem:[#allocation5 + $0x18] sm:$0xff]
        %v220 = vld [vmem:[#allocation5 + $0x20] sm:$0xff]
        %v221 = vld [vmem:[#allocation5 + $0x28] sm:$0xff]
        %v222 = vld [vmem:[#allocation5 + $0x30] sm:$0xff]
        %v223 = vld [vmem:[#allocation5 + $0x38] sm:$0xff]
        %v224 = vld [vmem:[#allocation5 + $0x40] sm:$0xff]
        %v225 = vld [vmem:[#allocation5 + $0x48] sm:$0xff]
        %v226 = vld [vmem:[#allocation5 + $0x50] sm:$0xff]
        %v227 = vld [vmem:[#allocation5 + $0x58] sm:$0xff]
        %v228 = vld [vmem:[#allocation5 + $0x60] sm:$0xff]
        %v229 = vld [vmem:[#allocation5 + $0x68] sm:$0xff]
        %v230 = vld [vmem:[#allocation5 + $0x70] sm:$0xff]
        %v231 = vld [vmem:[#allocation5 + $0x78] sm:$0xff]
        %232 = vmatprep.subr.mxu0 0.0
        %233 = vmatpush1.msra.mxu0 %v216
        %234 = vmatprep.subr.mxu0 0.0
        %235 = vmatpush1.msra.mxu0 %v217
        %236 = vmatprep.subr.mxu0 0.0
        %237 = vmatpush1.msra.mxu0 %v218
        %238 = vmatprep.subr.mxu0 0.0
        %239 = vmatpush1.msra.mxu0 %v219
        %240 = vmatprep.subr.mxu0 0.0
        %241 = vmatpush1.msra.mxu0 %v220
        %242 = vmatprep.subr.mxu0 0.0
        %243 = vmatpush1.msra.mxu0 %v221
        %244 = vmatprep.subr.mxu0 0.0
        %245 = vmatpush1.msra.mxu0 %v222
        %246 = vmatprep.subr.mxu0 0.0
        %247 = vmatpush1.msra.mxu0 %v223
        %248 = vmatprep.subr.mxu0 0.0
        %249 = vmatpush1.msra.mxu0 %v224
        %250 = vmatprep.subr.mxu0 0.0
        %251 = vmatpush1.msra.mxu0 %v225
        %252 = vmatprep.subr.mxu0 0.0
        %253 = vmatpush1.msra.mxu0 %v226
        %254 = vmatprep.subr.mxu0 0.0
        %255 = vmatpush1.msra.mxu0 %v227
        %256 = vmatprep.subr.mxu0 0.0
        %257 = vmatpush1.msra.mxu0 %v228
        %258 = vmatprep.subr.mxu0 0.0
        %259 = vmatpush1.msra.mxu0 %v229
        %260 = vmatprep.subr.mxu0 0.0
        %261 = vmatpush1.msra.mxu0 %v230
        %262 = vmatprep.subr.mxu0 0.0
        %263 = vmatpush1.msra.mxu0 %v231
        %264 = vmatprep.subr.mxu0 0.0
        %265 = vmatpush1.msra.mxu0 0.0
        %266 = vmatprep.subr.mxu0 0.0
        %267 = vmatpush1.msra.mxu0 0.0
        %268 = vmatprep.subr.mxu0 0.0
        %269 = vmatpush1.msra.mxu0 0.0
        %270 = vmatprep.subr.mxu0 0.0
        %271 = vmatpush1.msra.mxu0 0.0
        %272 = vmatprep.subr.mxu0 0.0
        %273 = vmatpush1.msra.mxu0 0.0
        %274 = vmatprep.subr.mxu0 0.0
        %275 = vmatpush1.msra.mxu0 0.0
        %276 = vmatprep.subr.mxu0 0.0
        %277 = vmatpush1.msra.mxu0 0.0
        %278 = vmatprep.subr.mxu0 0.0
        %279 = vmatpush1.msra.mxu0 0.0
        %280 = vmatprep.subr.mxu0 0.0
        %281 = vmatpush1.msra.mxu0 0.0
        %282 = vmatprep.subr.mxu0 0.0
        %283 = vmatpush1.msra.mxu0 0.0
        %284 = vmatprep.subr.mxu0 0.0
        %285 = vmatpush1.msra.mxu0 0.0
        %286 = vmatprep.subr.mxu0 0.0
        %287 = vmatpush1.msra.mxu0 0.0
        %288 = vmatprep.subr.mxu0 0.0
        %289 = vmatpush1.msra.mxu0 0.0
        %290 = vmatprep.subr.mxu0 0.0
        %291 = vmatpush1.msra.mxu0 0.0
        %292 = vmatprep.subr.mxu0 0.0
        %293 = vmatpush1.msra.mxu0 0.0
        %294 = vmatprep.subr.mxu0 0.0
        %295 = vmatpush1.msra.mxu0 0.0
        %296 = vmatprep.mubr.f32.mxu0 0.0
        %297 = vmatmul.mubr.f32.gmra.mrb[0].mxu0 %v215
        %v298 = vpop.f32.mrb[0].mxu0
        %v299 = vadd.f32 0.0, %v298
        %v300 = vpop.f32.mrb[0].mxu0
        %301 = vdwg.mxu0
        %v302 = vmax.f32 %v299, 0.0
        %v303 = vld [vmem:[#allocation7] sm:$0xff]
        %v304 = vld [vmem:[#allocation7 + $0x8] sm:$0xff]
        %v305 = vld [vmem:[#allocation7 + $0x10] sm:$0xff]
        %v306 = vld [vmem:[#allocation7 + $0x18] sm:$0xff]
        %v307 = vld [vmem:[#allocation7 + $0x20] sm:$0xff]
        %v308 = vld [vmem:[#allocation7 + $0x28] sm:$0xff]
        %v309 = vld [vmem:[#allocation7 + $0x30] sm:$0xff]
        %v310 = vld [vmem:[#allocation7 + $0x38] sm:$0xff]
        %v311 = vld [vmem:[#allocation7 + $0x40] sm:$0xff]
        %v312 = vld [vmem:[#allocation7 + $0x48] sm:$0xff]
        %v313 = vld [vmem:[#allocation7 + $0x50] sm:$0xff]
        %v314 = vld [vmem:[#allocation7 + $0x58] sm:$0xff]
        %v315 = vld [vmem:[#allocation7 + $0x60] sm:$0xff]
        %v316 = vld [vmem:[#allocation7 + $0x68] sm:$0xff]
        %v317 = vld [vmem:[#allocation7 + $0x70] sm:$0xff]
        %v318 = vld [vmem:[#allocation7 + $0x78] sm:$0xff]
        %319 = vmatprep.subr.mxu0 0.0
        %320 = vmatpush1.msra.mxu0 %v303
        %321 = vmatprep.subr.mxu0 0.0
        %322 = vmatpush1.msra.mxu0 %v304
        %323 = vmatprep.subr.mxu0 0.0
        %324 = vmatpush1.msra.mxu0 %v305
        %325 = vmatprep.subr.mxu0 0.0
        %326 = vmatpush1.msra.mxu0 %v306
        %327 = vmatprep.subr.mxu0 0.0
        %328 = vmatpush1.msra.mxu0 %v307
        %329 = vmatprep.subr.mxu0 0.0
        %330 = vmatpush1.msra.mxu0 %v308
        %331 = vmatprep.subr.mxu0 0.0
        %332 = vmatpush1.msra.mxu0 %v309
        %333 = vmatprep.subr.mxu0 0.0
        %334 = vmatpush1.msra.mxu0 %v310
        %335 = vmatprep.subr.mxu0 0.0
        %336 = vmatpush1.msra.mxu0 %v311
        %337 = vmatprep.subr.mxu0 0.0
        %338 = vmatpush1.msra.mxu0 %v312
        %339 = vmatprep.subr.mxu0 0.0
        %340 = vmatpush1.msra.mxu0 %v313
        %341 = vmatprep.subr.mxu0 0.0
        %342 = vmatpush1.msra.mxu0 %v314
        %343 = vmatprep.subr.mxu0 0.0
        %344 = vmatpush1.msra.mxu0 %v315
        %345 = vmatprep.subr.mxu0 0.0
        %346 = vmatpush1.msra.mxu0 %v316
        %347 = vmatprep.subr.mxu0 0.0
        %348 = vmatpush1.msra.mxu0 %v317
        %349 = vmatprep.subr.mxu0 0.0
        %350 = vmatpush1.msra.mxu0 %v318
        %351 = vmatprep.subr.mxu0 0.0
        %352 = vmatpush1.msra.mxu0 0.0
        %353 = vmatprep.subr.mxu0 0.0
        %354 = vmatpush1.msra.mxu0 0.0
        %355 = vmatprep.subr.mxu0 0.0
        %356 = vmatpush1.msra.mxu0 0.0
        %357 = vmatprep.subr.mxu0 0.0
        %358 = vmatpush1.msra.mxu0 0.0
        %359 = vmatprep.subr.mxu0 0.0
        %360 = vmatpush1.msra.mxu0 0.0
        %361 = vmatprep.subr.mxu0 0.0
        %362 = vmatpush1.msra.mxu0 0.0
        %363 = vmatprep.subr.mxu0 0.0
        %364 = vmatpush1.msra.mxu0 0.0
        %365 = vmatprep.subr.mxu0 0.0
        %366 = vmatpush1.msra.mxu0 0.0
        %367 = vmatprep.subr.mxu0 0.0
        %368 = vmatpush1.msra.mxu0 0.0
        %369 = vmatprep.subr.mxu0 0.0
        %370 = vmatpush1.msra.mxu0 0.0
        %371 = vmatprep.subr.mxu0 0.0
        %372 = vmatpush1.msra.mxu0 0.0
        %373 = vmatprep.subr.mxu0 0.0
        %374 = vmatpush1.msra.mxu0 0.0
        %375 = vmatprep.subr.mxu0 0.0
        %376 = vmatpush1.msra.mxu0 0.0
        %377 = vmatprep.subr.mxu0 0.0
        %378 = vmatpush1.msra.mxu0 0.0
        %379 = vmatprep.subr.mxu0 0.0
        %380 = vmatpush1.msra.mxu0 0.0
        %381 = vmatprep.subr.mxu0 0.0
        %382 = vmatpush1.msra.mxu0 0.0
        %383 = vmatprep.mubr.f32.mxu0 0.0
        %384 = vmatmul.mubr.f32.gmra.mrb[0].mxu0 %v302
        %v385 = vpop.f32.mrb[0].mxu0
        %v386 = vadd.f32 0.0, %v385
        %v387 = vpop.f32.mrb[0].mxu0
        %388 = vdwg.mxu0
        %v389 = vxor.u32 %v386, 2147483648
        %v390 = vmul.f32 %v389, 1.442695
        %v391 = vpow.pop %v390
        %v392 = vadd.f32 %v391, 1.0
        %v393 = vrcp.pop %v392
        %v394 = vmul.f32 1.0, %v393
        %v395 = vmul.f32 %v215, %v394
        %396 = vst [vmem:[%s214] sm:$0xff] %v395
        %s397 = sand.u32 %s97, 1
        %s398 = scalar_lea.sflag [#allocation4], %s397
        %s399 = sand.u32 %s97, 1
        %s400 = smul.addr %s399, 8
        %s401 = scalar_lea.vmem [#allocation8], %s400
        // Predicated region
        $region45: #{tpu_custom_call.1} parent=31 // pred_check
          %p402 = pneg %p107
        $region46: #{tpu_custom_call.1} parent=31 // pred_check_branch
          %404 = sbr.rel (%p402) target = $region48
        $region47: #{tpu_custom_call.1} parent=31 // pred_region
          %s406 = ssub.s32 128, 128
          %407 = vsyncadd %s398, %s406
          %s408 = smul.addr %s21, 128
          %s409 = scalar_lea.hbm %s3, %s408
          %s411 = sshll.u32 %s401, 4
          %s412 = int_to_ptr.vmem [resolvable:$true] %s411
          %414 = dma.vmem_to_hbm [thread:$0]  %s412, 128, %s409, %s398
        $region48: #{tpu_custom_call.1} parent=31 // pred_fallthru
          _
      $region32: #{tpu_custom_call.1} parent=5 // pred_fallthru
        _
      %p415 = scmp.le.s32.totalorder 2, %s16
      // Predicated region
      $region49: #{tpu_custom_call.1} parent=5 // pred_check
        %p416 = pneg %p415
      $region50: #{tpu_custom_call.1} parent=5 // pred_check_branch
        %418 = sbr.rel (%p416) target = $region52
      $region51: #{tpu_custom_call.1} parent=5 // pred_region
        %s419 = ssub.s32 %s16, 2
        // Predicated region
        $region53: #{tpu_custom_call.1} parent=51 // pred_check
          %p420 = pneg %p113
        $region54: #{tpu_custom_call.1} parent=51 // pred_check_branch
          %422 = sbr.rel (%p420) target = $region56
        $region55: #{tpu_custom_call.1} parent=51 // pred_region
          %s423 = sand.u32 %s98, 1
          %s424 = scalar_lea.sflag [#allocation4], %s423
          %s425 = sand.u32 %s98, 1
          %s426 = smul.addr %s425, 8
          %s427 = scalar_lea.vmem [#allocation8], %s426
          %428 = dma.done %s424, 128
        $region56: #{tpu_custom_call.1} parent=51 // pred_fallthru
          _
      $region52: #{tpu_custom_call.1} parent=5 // pred_fallthru
        _
    $region6: #{tpu_custom_call.1} parent=1 // loop_footer
      %s20 = sadd.s32 1, %s16
    $region7: #{tpu_custom_call.1} parent=1 // loop_footer_branch
      %15 = sbr.rel target = $region3
    $region8: #{tpu_custom_call.1} parent=1 // loop_exit
      _
    %429 = vsyncpa [#allocation3], 1
    %s430 = scalar_lea.sflag [#allocation3], 1
    %431 = vsyncpa %s430, 1
    %432 = vsyncpa [#allocation6], 1
    %433 = vsyncpa [#allocation4], 1
    %s434 = scalar_lea.sflag [#allocation4], 1
    %435 = vsyncpa %s434, 1

// kernel: tpu_custom_call.1
$region0: #{tpu_custom_call.1}
  #allocation0 [shape = 'u32[]', space=smem, size = 0x4, offset = 0x4, fixed_abs, tag = 'smem constant byte address 0x4 - core index']
  #allocation1 [shape = 'u32[144,128]{1,0:T(1,128)}', space=vmem, size = 0x12000, scoped, tag = 'internal scratch']
  %s0 = inlined_call_operand.hbm [shape: f32[16,128], index: 0, kind: input, shape index: {}]
  %s1 = inlined_call_operand.hbm [shape: f32[128,128], index: 1, kind: input, shape index: {}]
  %s2 = inlined_call_operand.hbm [shape: f32[128,128], index: 2, kind: input, shape index: {}]
  %s3 = inlined_call_operand.hbm [shape: f32[16,128], index: 3, kind: output, shape index: {}]
  %s4 = sld [smem:[#allocation0]]
  $region57: #{tpu_custom_call.1} parent=0
    _
  %s6 = ssub.s32 1, %s4
  %s7 = scalar_select 0, %s6, %s4
  $region1: #{tpu_custom_call.1} parent=0
    #allocation2 [shape = 'u8[8192]{0}', space=vmem, size = 0x2000, scoped, tag = 'input window, operand 0']
    #allocation3 [shape = 's32[2]{0}', space=sflag, size = 0x8, scoped, tag = 'scoped memory for tpu_custom_call.1']
    #allocation4 [shape = 's32[2]{0}', space=sflag, size = 0x8, scoped, tag = 'scoped memory for tpu_custom_call.1']
    #allocation5 [shape = 'u8[65536]{0}', space=vmem, size = 0x10000, scoped, tag = 'input window, operand 1, single buffered']
    #allocation6 [shape = 's32[1]{0}', space=sflag, size = 0x4, scoped, tag = 'scoped memory for tpu_custom_call.1']
    #allocation7 [shape = 'u8[65536]{0}', space=vmem, size = 0x10000, scoped, tag = 'input window, operand 2, single buffered']
    #allocation8 [shape = 'u8[8192]{0}', space=vmem, size = 0x2000, scoped, tag = 'output window, operand 0']
    %8 = vsyncpa [#allocation3], 0
    %s9 = scalar_lea.sflag [#allocation3], 1
    %10 = vsyncpa %s9, 0
    %11 = vsyncpa [#allocation6], 0
    %12 = vsyncpa [#allocation4], 0
    %s13 = scalar_lea.sflag [#allocation4], 1
    %14 = vsyncpa %s13, 0
    loop: start=0, step=1, limit=4
    $region2: #{tpu_custom_call.1} parent=1 // loop_pre_header
      _
    $region3: #{tpu_custom_call.1} parent=1 // loop_header
      %s16 = sphi 0, %s20
      %p17 = scmp.ge.s32.totalorder %s16, 4
      %s26 = sphi 0, %s28
      %s29 = sphi 0, %s26
      %s30 = sphi 0, %s29
      %s46 = sphi 0, %s30
      %s50 = sphi 0, %s50
      %s52 = sphi 0, %s50
      %s53 = sphi 0, %s52
      %s67 = sphi 0, %s53
      %s71 = sphi 0, %s71
      %s73 = sphi 0, %s71
      %s74 = sphi 0, %s73
      %s88 = sphi 0, %s74
      %s94 = sphi 0, %s96
      %s97 = sphi 0, %s94
      %s98 = sphi 0, %s97
      %s114 = sphi 0, %s98
    $region4: #{tpu_custom_call.1} parent=1 // loop_header_branch
      %19 = sbr.rel (%p17) target = $region8
    $region5: #{tpu_custom_call.1} parent=1 // loop_body
      %s21 = ssub.s32 %s16, 1
      %s22 = ssub.s32 %s16, 2
      %s23 = sadd.s32 %s16, 1
      %s24 = ssub.s32 %s16, %s23
      %p25 = scmp.eq.s32.totalorder %s24, 0
      %s27 = sadd.s32 %s26, 1
      %s28 = scalar_select %p25, %s26, %s27
      %p31 = pneg %p25
      %p32 = scmp.eq.s32.totalorder %s16, 1
      %p33 = por %p31, %p32
      %p34 = scmp.ne.s32.totalorder %s26, %s29
      %p35 = scmp.eq.s32.totalorder %s16, 0
      %p36 = por %p34, %p35
      %p37 = scmp.ne.s32.totalorder %s26, %s29
      %p38 = scmp.eq.s32.totalorder %s21, 1
      %p39 = por %p37, %p38
      %p40 = scmp.ne.s32.totalorder %s29, %s30
      %p41 = scmp.eq.s32.totalorder %s21, 0
      %p42 = por %p40, %p41
      %p43 = scmp.ne.s32.totalorder %s29, %s30
      %p44 = scmp.eq.s32.totalorder %s22, 1
      %p45 = por %p43, %p44
      %p47 = scmp.ne.s32.totalorder %s30, %s46
      %p48 = scmp.eq.s32.totalorder %s22, 0
      %p49 = por %p47, %p48
      %s51 = sadd.s32 %s50, 1
      %p54 = scmp.eq.s32.totalorder %s16, 1
      %p55 = scmp.ne.s32.totalorder %s50, %s52
      %p56 = scmp.eq.s32.totalorder %s16, 0
      %p57 = por %p55, %p56
      %p58 = scmp.ne.s32.totalorder %s50, %s52
      %p59 = scmp.eq.s32.totalorder %s21, 1
      %p60 = por %p58, %p59
      %p61 = scmp.ne.s32.totalorder %s52, %s53
      %p62 = scmp.eq.s32.totalorder %s21, 0
      %p63 = por %p61, %p62
      %p64 = scmp.ne.s32.totalorder %s52, %s53
      %p65 = scmp.eq.s32.totalorder %s22, 1
      %p66 = por %p64, %p65
      %p68 = scmp.ne.s32.totalorder %s53, %s67
      %p69 = scmp.eq.s32.totalorder %s22, 0
      %p70 = por %p68, %p69
      %s72 = sadd.s32 %s71, 1
      %p75 = scmp.eq.s32.totalorder %s16, 1
      %p76 = scmp.ne.s32.totalorder %s71, %s73
      %p77 = scmp.eq.s32.totalorder %s16, 0
      %p78 = por %p76, %p77
      %p79 = scmp.ne.s32.totalorder %s71, %s73
      %p80 = scmp.eq.s32.totalorder %s21, 1
      %p81 = por %p79, %p80
      %p82 = scmp.ne.s32.totalorder %s73, %s74
      %p83 = scmp.eq.s32.totalorder %s21, 0
      %p84 = por %p82, %p83
      %p85 = scmp.ne.s32.totalorder %s73, %s74
      %p86 = scmp.eq.s32.totalorder %s22, 1
      %p87 = por %p85, %p86
      %p89 = scmp.ne.s32.totalorder %s74, %s88
      %p90 = scmp.eq.s32.totalorder %s22, 0
      %p91 = por %p89, %p90
      %s92 = ssub.s32 %s16, %s23
      %p93 = scmp.eq.s32.totalorder %s92, 0
      %s95 = sadd.s32 %s94, 1
      %s96 = scalar_select %p93, %s94, %s95
      %p99 = pneg %p93
      %p100 = scmp.eq.s32.totalorder %s16, 1
      %p101 = por %p99, %p100
      %p102 = scmp.ne.s32.totalorder %s94, %s97
      %p103 = scmp.eq.s32.totalorder %s16, 0
      %p104 = por %p102, %p103
      %p105 = scmp.ne.s32.totalorder %s94, %s97
      %p106 = scmp.eq.s32.totalorder %s21, 1
      %p107 = por %p105, %p106
      %p108 = scmp.ne.s32.totalorder %s97, %s98
      %p109 = scmp.eq.s32.totalorder %s21, 0
      %p110 = por %p108, %p109
      %p111 = scmp.ne.s32.totalorder %s97, %s98
      %p112 = scmp.eq.s32.totalorder %s22, 1
      %p113 = por %p111, %p112
      %p115 = scmp.ne.s32.totalorder %s98, %s114
      %p116 = scmp.eq.s32.totalorder %s22, 0
      %p117 = por %p115, %p116
      %p118 = scmp.le.s32.totalorder 1, %s16
      %p119 = scmp.lt.s32.totalorder %s16, 3
      %p120 = pnand %p118, %p119
      %p121 = pneg %p120
      // Predicated region
      $region9: #{tpu_custom_call.1} parent=5 // pred_check
        _
      $region10: #{tpu_custom_call.1} parent=5 // pred_check_branch
        %123 = sbr.rel (%p120) target = $region12
      $region11: #{tpu_custom_call.1} parent=5 // pred_region
        %s124 = ssub.s32 %s16, 1
        // Predicated region
        $region13: #{tpu_custom_call.1} parent=11 // pred_check
          %p125 = pneg %p63
        $region14: #{tpu_custom_call.1} parent=11 // pred_check_branch
          %127 = sbr.rel (%p125) target = $region16
        $region15: #{tpu_custom_call.1} parent=11 // pred_region
          %s129 = ssub.s32 2048, 2048
          %130 = vsyncadd [#allocation6], %s129
          %s131 = sshll.u32 [#allocation5], 4
          %s132 = int_to_ptr.vmem [resolvable:$true] %s131
          %137 = dma.hbm_to_vmem [thread:$0]  %s1, 2048, %s132, [#allocation6], 128, 128, 8
        $region16: #{tpu_custom_call.1} parent=11 // pred_fallthru
          _
        // Predicated region
        $region17: #{tpu_custom_call.1} parent=11 // pred_check
          %p138 = pneg %p84
        $region18: #{tpu_custom_call.1} parent=11 // pred_check_branch
          %140 = sbr.rel (%p138) target = $region20
        $region19: #{tpu_custom_call.1} parent=11 // pred_region
          %s142 = ssub.s32 2048, 2048
          %143 = vsyncadd [#allocation6], %s142
          %s144 = sshll.u32 [#allocation7], 4
          %s145 = int_to_ptr.vmem [resolvable:$true] %s144
          %150 = dma.hbm_to_vmem [thread:$0]  %s2, 2048, %s145, [#allocation6], 128, 128, 8
        $region20: #{tpu_custom_call.1} parent=11 // pred_fallthru
          _
      $region12: #{tpu_custom_call.1} parent=5 // pred_fallthru
        _
      %p151 = scmp.lt.s32.totalorder %s16, 2
      // Predicated region
      $region21: #{tpu_custom_call.1} parent=5 // pred_check
        %p152 = pneg %p151
      $region22: #{tpu_custom_call.1} parent=5 // pred_check_branch
        %154 = sbr.rel (%p152) target = $region24
      $region23: #{tpu_custom_call.1} parent=5 // pred_region
        // Predicated region
        $region25: #{tpu_custom_call.1} parent=23 // pred_check
          %p155 = pneg %p36
        $region26: #{tpu_custom_call.1} parent=23 // pred_check_branch
          %157 = sbr.rel (%p155) target = $region28
        $region27: #{tpu_custom_call.1} parent=23 // pred_region
          %s158 = sand.u32 %s26, 1
          %s159 = scalar_lea.sflag [#allocation3], %s158
          %s160 = sand.u32 %s26, 1
          %s161 = smul.addr %s160, 8
          %s162 = scalar_lea.vmem [#allocation2], %s161
          %s164 = ssub.s32 128, 128
          %165 = vsyncadd %s159, %s164
          %s166 = smul.addr %s16, 128
          %s167 = scalar_lea.hbm %s0, %s166
          %s169 = sshll.u32 %s162, 4
          %s170 = int_to_ptr.vmem [resolvable:$true] %s169
          %172 = dma.hbm_to_vmem [thread:$0]  %s167, 128, %s170, %s159
        $region28: #{tpu_custom_call.1} parent=23 // pred_fallthru
          _
      $region24: #{tpu_custom_call.1} parent=5 // pred_fallthru
        _
      %p173 = scmp.le.s32.totalorder 1, %s16
      %p174 = scmp.lt.s32.totalorder %s16, 3
      %p175 = pnand %p173, %p174
      %p176 = pneg %p175
      // Predicated region
      $region29: #{tpu_custom_call.1} parent=5 // pred_check
        _
      $region30: #{tpu_custom_call.1} parent=5 // pred_check_branch
        %178 = sbr.rel (%p175) target = $region32
      $region31: #{tpu_custom_call.1} parent=5 // pred_region
        %s179 = ssub.s32 %s16, 1
        %s180 = sand.u32 %s29, 1
        %s181 = scalar_lea.sflag [#allocation3], %s180
        %s182 = sand.u32 %s29, 1
        %s183 = smul.addr %s182, 8
        %s184 = scalar_lea.vmem [#allocation2], %s183
        // Predicated region
        $region33: #{tpu_custom_call.1} parent=31 // pred_check
          %p185 = pneg %p42
        $region34: #{tpu_custom_call.1} parent=31 // pred_check_branch
          %187 = sbr.rel (%p185) target = $region36
        $region35: #{tpu_custom_call.1} parent=31 // pred_region
          %188 = dma.done %s181, 128
        $region36: #{tpu_custom_call.1} parent=31 // pred_fallthru
          _
        // Predicated region
        $region37: #{tpu_custom_call.1} parent=31 // pred_check
          %p189 = pneg %p63
        $region38: #{tpu_custom_call.1} parent=31 // pred_check_branch
          %191 = sbr.rel (%p189) target = $region40
        $region39: #{tpu_custom_call.1} parent=31 // pred_region
          %192 = dma.done [#allocation6], 2048
        $region40: #{tpu_custom_call.1} parent=31 // pred_fallthru
          _
        // Predicated region
        $region41: #{tpu_custom_call.1} parent=31 // pred_check
          %p193 = pneg %p84
        $region42: #{tpu_custom_call.1} parent=31 // pred_check_branch
          %195 = sbr.rel (%p193) target = $region44
        $region43: #{tpu_custom_call.1} parent=31 // pred_region
          %196 = dma.done [#allocation6], 2048
        $region44: #{tpu_custom_call.1} parent=31 // pred_fallthru
          _
        %s197 = sand.u32 %s29, 1
        %s198 = scalar_lea.sflag [#allocation3], %s197
        %s199 = sand.u32 %s29, 1
        %s200 = smul.addr %s199, 8
        %s201 = scalar_lea.vmem [#allocation2], %s200
        %p202 = pneg %p42
        %p203 = pneg %p39
        %p204 = pneg %p63
        %p205 = pneg %p60
        %p206 = pneg %p84
        %p207 = pneg %p81
        %p208 = pneg %p110
        %p209 = pneg %p107
        %s210 = sand.u32 %s97, 1
        %s211 = scalar_lea.sflag [#allocation4], %s210
        %s212 = sand.u32 %s97, 1
        %s213 = smul.addr %s212, 8
        %s214 = scalar_lea.vmem [#allocation8], %s213
        %v215 = vld [vmem:[%s184] sm:$0xff]
        %v216 = vld [vmem:[#allocation5] sm:$0xff]
        %v217 = vld [vmem:[#allocation5 + $0x8] sm:$0xff]
        %v218 = vld [vmem:[#allocation5 + $0x10] sm:$0xff]
        %v219 = vld [vmem:[#allocation5 + $0x18] sm:$0xff]
        %v220 = vld [vmem:[#allocation5 + $0x20] sm:$0xff]
        %v221 = vld [vmem:[#allocation5 + $0x28] sm:$0xff]
        %v222 = vld [vmem:[#allocation5 + $0x30] sm:$0xff]
        %v223 = vld [vmem:[#allocation5 + $0x38] sm:$0xff]
        %v224 = vld [vmem:[#allocation5 + $0x40] sm:$0xff]
        %v225 = vld [vmem:[#allocation5 + $0x48] sm:$0xff]
        %v226 = vld [vmem:[#allocation5 + $0x50] sm:$0xff]
        %v227 = vld [vmem:[#allocation5 + $0x58] sm:$0xff]
        %v228 = vld [vmem:[#allocation5 + $0x60] sm:$0xff]
        %v229 = vld [vmem:[#allocation5 + $0x68] sm:$0xff]
        %v230 = vld [vmem:[#allocation5 + $0x70] sm:$0xff]
        %v231 = vld [vmem:[#allocation5 + $0x78] sm:$0xff]
        %232 = vmatprep.subr.mxu0 0.0
        %233 = vmatpush1.msra.mxu0 %v216
        %234 = vmatprep.subr.mxu0 0.0
        %235 = vmatpush1.msra.mxu0 %v217
        %236 = vmatprep.subr.mxu0 0.0
        %237 = vmatpush1.msra.mxu0 %v218
        %238 = vmatprep.subr.mxu0 0.0
        %239 = vmatpush1.msra.mxu0 %v219
        %240 = vmatprep.subr.mxu0 0.0
        %241 = vmatpush1.msra.mxu0 %v220
        %242 = vmatprep.subr.mxu0 0.0
        %243 = vmatpush1.msra.mxu0 %v221
        %244 = vmatprep.subr.mxu0 0.0
        %245 = vmatpush1.msra.mxu0 %v222
        %246 = vmatprep.subr.mxu0 0.0
        %247 = vmatpush1.msra.mxu0 %v223
        %248 = vmatprep.subr.mxu0 0.0
        %249 = vmatpush1.msra.mxu0 %v224
        %250 = vmatprep.subr.mxu0 0.0
        %251 = vmatpush1.msra.mxu0 %v225
        %252 = vmatprep.subr.mxu0 0.0
        %253 = vmatpush1.msra.mxu0 %v226
        %254 = vmatprep.subr.mxu0 0.0
        %255 = vmatpush1.msra.mxu0 %v227
        %256 = vmatprep.subr.mxu0 0.0
        %257 = vmatpush1.msra.mxu0 %v228
        %258 = vmatprep.subr.mxu0 0.0
        %259 = vmatpush1.msra.mxu0 %v229
        %260 = vmatprep.subr.mxu0 0.0
        %261 = vmatpush1.msra.mxu0 %v230
        %262 = vmatprep.subr.mxu0 0.0
        %263 = vmatpush1.msra.mxu0 %v231
        %264 = vmatprep.subr.mxu0 0.0
        %265 = vmatpush1.msra.mxu0 0.0
        %266 = vmatprep.subr.mxu0 0.0
        %267 = vmatpush1.msra.mxu0 0.0
        %268 = vmatprep.subr.mxu0 0.0
        %269 = vmatpush1.msra.mxu0 0.0
        %270 = vmatprep.subr.mxu0 0.0
        %271 = vmatpush1.msra.mxu0 0.0
        %272 = vmatprep.subr.mxu0 0.0
        %273 = vmatpush1.msra.mxu0 0.0
        %274 = vmatprep.subr.mxu0 0.0
        %275 = vmatpush1.msra.mxu0 0.0
        %276 = vmatprep.subr.mxu0 0.0
        %277 = vmatpush1.msra.mxu0 0.0
        %278 = vmatprep.subr.mxu0 0.0
        %279 = vmatpush1.msra.mxu0 0.0
        %280 = vmatprep.subr.mxu0 0.0
        %281 = vmatpush1.msra.mxu0 0.0
        %282 = vmatprep.subr.mxu0 0.0
        %283 = vmatpush1.msra.mxu0 0.0
        %284 = vmatprep.subr.mxu0 0.0
        %285 = vmatpush1.msra.mxu0 0.0
        %286 = vmatprep.subr.mxu0 0.0
        %287 = vmatpush1.msra.mxu0 0.0
        %288 = vmatprep.subr.mxu0 0.0
        %289 = vmatpush1.msra.mxu0 0.0
        %290 = vmatprep.subr.mxu0 0.0
        %291 = vmatpush1.msra.mxu0 0.0
        %292 = vmatprep.subr.mxu0 0.0
        %293 = vmatpush1.msra.mxu0 0.0
        %294 = vmatprep.subr.mxu0 0.0
        %295 = vmatpush1.msra.mxu0 0.0
        %296 = vmatprep.mubr.f32.mxu0 0.0
        %297 = vmatmul.mubr.f32.gmra.mrb[0].mxu0 %v215
        %v298 = vpop.f32.mrb[0].mxu0
        %v299 = vadd.f32 0.0, %v298
        %v300 = vpop.f32.mrb[0].mxu0
        %301 = vdwg.mxu0
        %v302 = vmax.f32 %v299, 0.0
        %v303 = vld [vmem:[#allocation7] sm:$0xff]
        %v304 = vld [vmem:[#allocation7 + $0x8] sm:$0xff]
        %v305 = vld [vmem:[#allocation7 + $0x10] sm:$0xff]
        %v306 = vld [vmem:[#allocation7 + $0x18] sm:$0xff]
        %v307 = vld [vmem:[#allocation7 + $0x20] sm:$0xff]
        %v308 = vld [vmem:[#allocation7 + $0x28] sm:$0xff]
        %v309 = vld [vmem:[#allocation7 + $0x30] sm:$0xff]
        %v310 = vld [vmem:[#allocation7 + $0x38] sm:$0xff]
        %v311 = vld [vmem:[#allocation7 + $0x40] sm:$0xff]
        %v312 = vld [vmem:[#allocation7 + $0x48] sm:$0xff]
        %v313 = vld [vmem:[#allocation7 + $0x50] sm:$0xff]
        %v314 = vld [vmem:[#allocation7 + $0x58] sm:$0xff]
        %v315 = vld [vmem:[#allocation7 + $0x60] sm:$0xff]
        %v316 = vld [vmem:[#allocation7 + $0x68] sm:$0xff]
        %v317 = vld [vmem:[#allocation7 + $0x70] sm:$0xff]
        %v318 = vld [vmem:[#allocation7 + $0x78] sm:$0xff]
        %319 = vmatprep.subr.mxu0 0.0
        %320 = vmatpush1.msra.mxu0 %v303
        %321 = vmatprep.subr.mxu0 0.0
        %322 = vmatpush1.msra.mxu0 %v304
        %323 = vmatprep.subr.mxu0 0.0
        %324 = vmatpush1.msra.mxu0 %v305
        %325 = vmatprep.subr.mxu0 0.0
        %326 = vmatpush1.msra.mxu0 %v306
        %327 = vmatprep.subr.mxu0 0.0
        %328 = vmatpush1.msra.mxu0 %v307
        %329 = vmatprep.subr.mxu0 0.0
        %330 = vmatpush1.msra.mxu0 %v308
        %331 = vmatprep.subr.mxu0 0.0
        %332 = vmatpush1.msra.mxu0 %v309
        %333 = vmatprep.subr.mxu0 0.0
        %334 = vmatpush1.msra.mxu0 %v310
        %335 = vmatprep.subr.mxu0 0.0
        %336 = vmatpush1.msra.mxu0 %v311
        %337 = vmatprep.subr.mxu0 0.0
        %338 = vmatpush1.msra.mxu0 %v312
        %339 = vmatprep.subr.mxu0 0.0
        %340 = vmatpush1.msra.mxu0 %v313
        %341 = vmatprep.subr.mxu0 0.0
        %342 = vmatpush1.msra.mxu0 %v314
        %343 = vmatprep.subr.mxu0 0.0
        %344 = vmatpush1.msra.mxu0 %v315
        %345 = vmatprep.subr.mxu0 0.0
        %346 = vmatpush1.msra.mxu0 %v316
        %347 = vmatprep.subr.mxu0 0.0
        %348 = vmatpush1.msra.mxu0 %v317
        %349 = vmatprep.subr.mxu0 0.0
        %350 = vmatpush1.msra.mxu0 %v318
        %351 = vmatprep.subr.mxu0 0.0
        %352 = vmatpush1.msra.mxu0 0.0
        %353 = vmatprep.subr.mxu0 0.0
        %354 = vmatpush1.msra.mxu0 0.0
        %355 = vmatprep.subr.mxu0 0.0
        %356 = vmatpush1.msra.mxu0 0.0
        %357 = vmatprep.subr.mxu0 0.0
        %358 = vmatpush1.msra.mxu0 0.0
        %359 = vmatprep.subr.mxu0 0.0
        %360 = vmatpush1.msra.mxu0 0.0
        %361 = vmatprep.subr.mxu0 0.0
        %362 = vmatpush1.msra.mxu0 0.0
        %363 = vmatprep.subr.mxu0 0.0
        %364 = vmatpush1.msra.mxu0 0.0
        %365 = vmatprep.subr.mxu0 0.0
        %366 = vmatpush1.msra.mxu0 0.0
        %367 = vmatprep.subr.mxu0 0.0
        %368 = vmatpush1.msra.mxu0 0.0
        %369 = vmatprep.subr.mxu0 0.0
        %370 = vmatpush1.msra.mxu0 0.0
        %371 = vmatprep.subr.mxu0 0.0
        %372 = vmatpush1.msra.mxu0 0.0
        %373 = vmatprep.subr.mxu0 0.0
        %374 = vmatpush1.msra.mxu0 0.0
        %375 = vmatprep.subr.mxu0 0.0
        %376 = vmatpush1.msra.mxu0 0.0
        %377 = vmatprep.subr.mxu0 0.0
        %378 = vmatpush1.msra.mxu0 0.0
        %379 = vmatprep.subr.mxu0 0.0
        %380 = vmatpush1.msra.mxu0 0.0
        %381 = vmatprep.subr.mxu0 0.0
        %382 = vmatpush1.msra.mxu0 0.0
        %383 = vmatprep.mubr.f32.mxu0 0.0
        %384 = vmatmul.mubr.f32.gmra.mrb[0].mxu0 %v302
        %v385 = vpop.f32.mrb[0].mxu0
        %v386 = vadd.f32 0.0, %v385
        %v387 = vpop.f32.mrb[0].mxu0
        %388 = vdwg.mxu0
        %v389 = vxor.u32 %v386, 2147483648
        %v390 = vmul.f32 %v389, 1.442695
        %v391 = vpow.pop %v390
        %v392 = vadd.f32 %v391, 1.0
        %v393 = vrcp.pop %v392
        %v394 = vmul.f32 1.0, %v393
        %v395 = vmul.f32 %v215, %v394
        %396 = vst [vmem:[%s214] sm:$0xff] %v395
        %s397 = sand.u32 %s97, 1
        %s398 = scalar_lea.sflag [#allocation4], %s397
        %s399 = sand.u32 %s97, 1
        %s400 = smul.addr %s399, 8
        %s401 = scalar_lea.vmem [#allocation8], %s400
        // Predicated region
        $region45: #{tpu_custom_call.1} parent=31 // pred_check
          %p402 = pneg %p107
        $region46: #{tpu_custom_call.1} parent=31 // pred_check_branch
          %404 = sbr.rel (%p402) target = $region48
        $region47: #{tpu_custom_call.1} parent=31 // pred_region
          %s406 = ssub.s32 128, 128
          %407 = vsyncadd %s398, %s406
          %s408 = smul.addr %s21, 128
          %s409 = scalar_lea.hbm %s3, %s408
          %s411 = sshll.u32 %s401, 4
          %s412 = int_to_ptr.vmem [resolvable:$true] %s411
          %414 = dma.vmem_to_hbm [thread:$0]  %s412, 128, %s409, %s398
        $region48: #{tpu_custom_call.1} parent=31 // pred_fallthru
          _
      $region32: #{tpu_custom_call.1} parent=5 // pred_fallthru
        _
      %p415 = scmp.le.s32.totalorder 2, %s16
      // Predicated region
      $region49: #{tpu_custom_call.1} parent=5 // pred_check
        %p416 = pneg %p415
      $region50: #{tpu_custom_call.1} parent=5 // pred_check_branch
        %418 = sbr.rel (%p416) target = $region52
      $region51: #{tpu_custom_call.1} parent=5 // pred_region
        %s419 = ssub.s32 %s16, 2
        // Predicated region
        $region53: #{tpu_custom_call.1} parent=51 // pred_check
          %p420 = pneg %p113
        $region54: #{tpu_custom_call.1} parent=51 // pred_check_branch
          %422 = sbr.rel (%p420) target = $region56
        $region55: #{tpu_custom_call.1} parent=51 // pred_region
          %s423 = sand.u32 %s98, 1
          %s424 = scalar_lea.sflag [#allocation4], %s423
          %s425 = sand.u32 %s98, 1
          %s426 = smul.addr %s425, 8
          %s427 = scalar_lea.vmem [#allocation8], %s426
          %428 = dma.done %s424, 128
        $region56: #{tpu_custom_call.1} parent=51 // pred_fallthru
          _
      $region52: #{tpu_custom_call.1} parent=5 // pred_fallthru
        _
    $region6: #{tpu_custom_call.1} parent=1 // loop_footer
      %s20 = sadd.s32 1, %s16
    $region7: #{tpu_custom_call.1} parent=1 // loop_footer_branch
      %15 = sbr.rel target = $region3
    $region8: #{tpu_custom_call.1} parent=1 // loop_exit
      _
    %429 = vsyncpa [#allocation3], 1
    %s430 = scalar_lea.sflag [#allocation3], 1
    %431 = vsyncpa %s430, 1
    %432 = vsyncpa [#allocation6], 1
    %433 = vsyncpa [#allocation4], 1
    %s434 = scalar_lea.sflag [#allocation4], 1
    %435 = vsyncpa %s434, 1

</llo_original>
